<compile_context>
chip_gen: v6e
topology: v6e:2x2x1
jax: 0.10.0
libtpu: 0.0.40
codegen_flags: <defaults>
</compile_context>

<pallas_src>
import math
import numpy as np
import jax
import jax.numpy as jnp
from jax.experimental import pallas as pl
from jax.experimental.pallas import tpu as pltpu

# ----------------------------- config ---------------------------------------
N_CH = 8            # "N" in the reference (128 originally)
M_CH = 16           # "M" in the reference (320 originally)
NAT_DEPTHS = [1, 1, 1, 1, 1, 1]          # originally [2, 2, 6, 2, 2, 2]
NAT_HEADS = [2, 2, 4, 4, 2, 2]           # originally [8, 12, 16, 20, 12, 12]
NAT_KERNEL = 7
MLP_RATIO = 2.0
SWIN_HEADS = 4
RATE_CHOICE = [4, 8, 12, 16]             # config.multiple_rate
ETA = 0.2                                # config.eta
SNR_DB = 10.0                            # AWGN channel SNR
_ROW_TILE = 512                          # row tile for all linear/conv matmuls


def _vmem_limit_bytes():
    # Per-generation VMEM budget: leave ~12 MiB headroom, cap at 112 MiB so
    # v5e/v6e (128 MiB) behave as before and v7x (64 MiB) gets ~52 MiB.
    try:
        cap = int(pltpu.get_tpu_info().vmem_capacity_bytes)
    except Exception:
        cap = 128 * 1024 * 1024
    return int(min(cap - 12 * 1024 * 1024, 112 * 1024 * 1024))


VMEM_LIMIT = _vmem_limit_bytes()
_MOSAIC = pltpu.CompilerParams(vmem_limit_bytes=VMEM_LIMIT)
_MOSAIC_PAR1 = pltpu.CompilerParams(dimension_semantics=("parallel",),
                                    vmem_limit_bytes=VMEM_LIMIT)


# --------------------------- Pallas kernels ---------------------------------
def _ln(x, g, b):
    mu = jnp.mean(x, axis=-1, keepdims=True)
    var = jnp.mean((x - mu) ** 2, axis=-1, keepdims=True)
    return (x - mu) * jax.lax.rsqrt(var + 1e-5) * g + b


def _matmul_bias_kernel(x_ref, w_ref, b_ref, o_ref):
    x = x_ref[...].astype(jnp.bfloat16)
    w = w_ref[...].astype(jnp.bfloat16)
    o_ref[...] = jnp.dot(x, w, preferred_element_type=jnp.float32) + b_ref[...]


def _matmul_bias_res_kernel(x_ref, res_ref, w_ref, b_ref, o_ref):
    x = x_ref[...].astype(jnp.bfloat16)
    w = w_ref[...].astype(jnp.bfloat16)
    o_ref[...] = (res_ref[...] +
                  jnp.dot(x, w, preferred_element_type=jnp.float32) + b_ref[...])


def _ln_matmul_bias_kernel(x_ref, g_ref, bg_ref, w_ref, b_ref, o_ref):
    h = _ln(x_ref[...], g_ref[...], bg_ref[...]).astype(jnp.bfloat16)
    w = w_ref[...].astype(jnp.bfloat16)
    o_ref[...] = jnp.dot(h, w, preferred_element_type=jnp.float32) + b_ref[...]


def _mlp_res_kernel(x_ref, g_ref, bg_ref, w1_ref, b1_ref, w2_ref, b2_ref, o_ref):
    x = x_ref[...]
    h = _ln(x, g_ref[...], bg_ref[...]).astype(jnp.bfloat16)
    h1 = jnp.dot(h, w1_ref[...].astype(jnp.bfloat16),
                 preferred_element_type=jnp.float32) + b1_ref[...]
    h1 = jax.nn.gelu(h1, approximate=False).astype(jnp.bfloat16)
    o_ref[...] = x + jnp.dot(h1, w2_ref[...].astype(jnp.bfloat16),
                             preferred_element_type=jnp.float32) + b2_ref[...]


def _attn_kernel(q_ref, k_ref, v_ref, b_ref, o_ref):
    # blocks: q/k/v (1, heads, L, D); bias (heads, Lq, Lk) resident across grid.
    q = q_ref[0].astype(jnp.bfloat16)
    k = k_ref[0].astype(jnp.bfloat16)
    v = v_ref[0].astype(jnp.bfloat16)
    s = jnp.einsum('hqd,hkd->hqk', q, k,
                   preferred_element_type=jnp.float32) + b_ref[...]
    s = s - jnp.max(s, axis=-1, keepdims=True)
    p = jnp.exp(s)
    inv = pl.reciprocal(jnp.sum(p, axis=-1, keepdims=True), approx=True)
    p = (p * inv).astype(jnp.bfloat16)
    o_ref[0] = jnp.einsum('hqk,hkd->hqd', p, v, preferred_element_type=jnp.float32)


def _gauss_lik_kernel(y_ref, s_ref, m_ref, o_ref):
    v = jnp.abs(y_ref[...] - m_ref[...])
    s = jnp.maximum(s_ref[...], 0.11)          # scale lower bound
    inv = 1.0 / s
    c = 2.0 ** -0.5
    upper = 0.5 * (1.0 + jax.lax.erf((0.5 - v) * inv * c))
    lower = 0.5 * (1.0 + jax.lax.erf((-0.5 - v) * inv * c))
    o_ref[...] = jnp.maximum(upper - lower, 1e-9)   # likelihood lower bound


# ------------------------- Pallas wrappers ----------------------------------
def _call_rows(kernel, out_cols, row_args, full_args, out_dtype=jnp.float32):
    """Row-tiled pallas_call: `row_args` are (M, *) arrays tiled over rows with
    a 'parallel' grid; `full_args` (weights/biases/LN params) are resident."""
    m = row_args[0].shape[0]
    if m >= _ROW_TILE:
        tm = _ROW_TILE
        grid_m = pl.cdiv(m, tm)
        mp = grid_m * tm
    else:
        tm, grid_m, mp = m, 1, m
    if mp != m:
        row_args = [jnp.pad(a, ((0, mp - m), (0, 0))) for a in row_args]
    in_specs = [pl.BlockSpec((tm, a.shape[1]), lambda i: (i, 0)) for a in row_args]
    in_specs += [pl.BlockSpec(a.shape, lambda i, nd=a.ndim: (0,) * nd)
                 for a in full_args]
    out = pl.pallas_call(
        kernel,
        grid=(grid_m,),
        in_specs=in_specs,
        out_specs=pl.BlockSpec((tm, out_cols), lambda i: (i, 0)),
        out_shape=jax.ShapeDtypeStruct((mp, out_cols), out_dtype),
        compiler_params=_MOSAIC_PAR1,
    )(*row_args, *full_args)
    return out if mp == m else out[:m]


def matmul_bias(x, w, b):
    n = w.shape[1]
    return _call_rows(_matmul_bias_kernel, n, [x], [w, b.reshape(1, n)])


def matmul_bias_res(x, res, w, b):
    n = w.shape[1]
    return _call_rows(_matmul_bias_res_kernel, n, [x, res], [w, b.reshape(1, n)])


def ln_matmul_bias(x, g, bg, w, b):
    c = x.shape[1]
    n = w.shape[1]
    return _call_rows(_ln_matmul_bias_kernel, n, [x],
                      [g.reshape(1, c), bg.reshape(1, c), w, b.reshape(1, n)])


def mlp_res(x, g, bg, w1, b1, w2, b2):
    c = x.shape[1]
    hdim = w1.shape[1]
    return _call_rows(_mlp_res_kernel, c, [x],
                      [g.reshape(1, c), bg.reshape(1, c),
                       w1, b1.reshape(1, hdim), w2, b2.reshape(1, c)])


def attention(q, k, v, bias):
    # q/k/v: (B, heads, L, D); bias: (heads, Lq, Lk). One grid step per batch,
    # all heads batched in-kernel; bias block index is constant -> no re-fetch.
    b, h, lq, d = q.shape
    lk = k.shape[2]
    return pl.pallas_call(
        _attn_kernel,
        grid=(b,),
        in_specs=[
            pl.BlockSpec((1, h, lq, d), lambda i: (i, 0, 0, 0)),
            pl.BlockSpec((1, h, lk, d), lambda i: (i, 0, 0, 0)),
            pl.BlockSpec((1, h, lk, d), lambda i: (i, 0, 0, 0)),
            pl.BlockSpec((h, lq, lk), lambda i: (0, 0, 0)),
        ],
        out_specs=pl.BlockSpec((1, h, lq, d), lambda i: (i, 0, 0, 0)),
        out_shape=jax.ShapeDtypeStruct((b, h, lq, d), jnp.float32),
        compiler_params=_MOSAIC_PAR1,
    )(q, k, v, bias)
    # TODO(synk): at original hyper-params (L~1024, heads up to 20) this should
    # be blocked flash-style along Lq/Lk to stay inside v7x's 64 MiB VMEM.


def gaussian_likelihood(y_noisy, scales, means):
    # Lane-dense: flatten everything and process as (n, 128) rows.
    shp = y_noisy.shape
    n = int(np.prod(shp))
    lane = 128
    npad = (-n) % lane

    def prep(a):
        a = a.reshape(-1)
        if npad:
            a = jnp.pad(a, (0, npad))
        return a.reshape(-1, lane)

    y2, s2, m2 = prep(y_noisy), prep(scales), prep(means)
    out = pl.pallas_call(
        _gauss_lik_kernel,
        out_shape=jax.ShapeDtypeStruct(y2.shape, jnp.float32),
        compiler_params=_MOSAIC,
    )(y2, s2, m2)
    out = out.reshape(-1)
    if npad:
        out = out[:n]
    return out.reshape(shp)


# ---------------------------- conv / deconv ----------------------------------
# NHWC im2col: patches are built by concatenation along the channel axis (no
# 5-D transpose), channels stay on the TPU lane axis end-to-end.
def conv2d(x, w, b, stride=1, padding=0):
    bn, h, wdt, c = x.shape
    cout, cin, kh, kw = w.shape
    xp = jnp.pad(x, ((0, 0), (padding, padding), (padding, padding), (0, 0)))
    ho = (h + 2 * padding - kh) // stride + 1
    wo = (wdt + 2 * padding - kw) // stride + 1
    cols = []
    for i in range(kh):
        for j in range(kw):
            cols.append(xp[:, i:i + (ho - 1) * stride + 1:stride,
                           j:j + (wo - 1) * stride + 1:stride, :])
    patches = jnp.concatenate(cols, axis=-1).reshape(bn * ho * wo, kh * kw * c)
    wmat = w.transpose(2, 3, 1, 0).reshape(kh * kw * cin, cout)
    out = matmul_bias(patches, wmat, b)
    return out.reshape(bn, ho, wo, cout)


def deconv2d(x, w, b, stride=2, padding=0, output_padding=0):
    # w: (Cin, Cout, kh, kw)  (PyTorch ConvTranspose2d layout)
    # TODO(synk): could be a sub-pixel conv (no zero-insertion); kept simple.
    bn, h, wdt, c = x.shape
    cin, cout, kh, kw = w.shape
    hd, wd = (h - 1) * stride + 1, (wdt - 1) * stride + 1
    xd = jnp.zeros((bn, hd, wd, c), x.dtype).at[:, ::stride, ::stride, :].set(x)
    pbh, pah = kh - 1 - padding, kh - 1 - padding + output_padding
    pbw, paw = kw - 1 - padding, kw - 1 - padding + output_padding
    xp = jnp.pad(xd, ((0, 0), (pbh, pah), (pbw, paw), (0, 0)))
    wf = jnp.flip(w, axis=(2, 3)).transpose(1, 0, 2, 3)
    return conv2d(xp, wf, b, stride=1, padding=0)


# ------------------------- transformer pieces --------------------------------
def transformer_block(tokens, p, heads, bias):
    # TODO(synk): drop_path treated as identity (eval-mode semantics).
    b, l, c = tokens.shape
    hd = c // heads
    x2 = tokens.reshape(b * l, c)
    qkv = ln_matmul_bias(x2, p['ln1']['g'], p['ln1']['b'],
                         p['qkv']['w'], p['qkv']['b'])
    qkv = qkv.reshape(b, l, 3, heads, hd).transpose(2, 0, 3, 1, 4)
    q = qkv[0] * (hd ** -0.5)
    k, v = qkv[1], qkv[2]
    o = attention(q, k, v, bias)                       # (b, heads, l, hd)
    o = o.transpose(0, 2, 1, 3).reshape(b * l, c)
    x2 = matmul_bias_res(o, x2, p['proj']['w'], p['proj']['b'])
    out = mlp_res(x2, p['ln2']['g'], p['ln2']['b'],
                  p['fc1']['w'], p['fc1']['b'], p['fc2']['w'], p['fc2']['b'])
    return out.reshape(b, l, c)


def nat_bias(h, w, k, rpb):
    # Neighborhood-attention mask (clamped windows) + relative position bias.
    # TODO(synk): edge-pixel rpb indexing differs slightly from NATTEN's
    # window-anchored indexing; interior positions match.
    heads = rpb.shape[0]
    kr, kc = min(k, h), min(k, w)
    r = jnp.arange(h)
    c = jnp.arange(w)
    start_r = jnp.clip(r - (k - 1) // 2, 0, max(h - k, 0))
    start_c = jnp.clip(c - (k - 1) // 2, 0, max(w - k, 0))
    in_r = (r[None, :] >= start_r[:, None]) & (r[None, :] < start_r[:, None] + kr)
    in_c = (c[None, :] >= start_c[:, None]) & (c[None, :] < start_c[:, None] + kc)
    mask = in_r[:, None, :, None] & in_c[None, :, None, :]          # (H,W,H,W)
    idx_r = jnp.clip(r[:, None] - r[None, :] + k - 1, 0, 2 * k - 2)
    idx_c = jnp.clip(c[:, None] - c[None, :] + k - 1, 0, 2 * k - 2)
    bias = rpb[:, idx_r[:, None, :, None], idx_c[None, :, None, :]]  # (h,H,W,H,W)
    bias = jnp.where(mask[None], bias, -1e9)
    return bias.reshape(heads, h * w, h * w)


def swin_bias(h, w, rpb_table):
    coords = jnp.stack(jnp.meshgrid(jnp.arange(h), jnp.arange(w), indexing='ij'),
                       0).reshape(2, -1)
    rel = coords[:, :, None] - coords[:, None, :]
    idx = (rel[0] + h - 1) * (2 * w - 1) + (rel[1] + w - 1)
    bias = rpb_table[idx]                            # (L, L, heads)
    return bias.transpose(2, 0, 1)                   # (heads, L, L)


def resvit_block(x, p):
    b, h, w, c = x.shape
    tokens = x.reshape(b, h * w, c)
    out = tokens
    for blk in p['blocks']:
        out = transformer_block(out, blk, p['heads'], blk['bias'])
    return out.reshape(b, h, w, c) + x               # ResViTBlock residual


def swin_layer(x, p):
    # TODO(synk): window partition / cyclic shift omitted — the window covers
    # the full (small) resolution here, so shift=0 global attention is exact.
    b, h, w, c = x.shape
    tokens = x.reshape(b, h * w, c)
    for blk in p['blocks']:
        tokens = transformer_block(tokens, blk, p['heads'], blk['bias'])
    return tokens.reshape(b, h, w, c)


def cross_block(xt, kvt, p, heads):
    # TODO(synk): CrossAttentionLayer source not provided — pre-norm
    # cross-attention (+MLP) block used as the equivalent.
    b, l, c = xt.shape
    hd = c // heads
    x2 = xt.reshape(b * l, c)
    kv2 = kvt.reshape(b * l, c)
    q = ln_matmul_bias(x2, p['ln1']['g'], p['ln1']['b'], p['q']['w'], p['q']['b'])
    kv = ln_matmul_bias(kv2, p['ln_kv']['g'], p['ln_kv']['b'],
                        p['kv']['w'], p['kv']['b'])
    q = q.reshape(b, l, heads, hd).transpose(0, 2, 1, 3) * (hd ** -0.5)
    kv = kv.reshape(b, l, 2, heads, hd).transpose(2, 0, 3, 1, 4)
    k, v = kv[0], kv[1]
    bias = jnp.zeros((heads, l, l), jnp.float32)
    o = attention(q, k, v, bias)
    o = o.transpose(0, 2, 1, 3).reshape(b * l, c)
    x2 = matmul_bias_res(o, x2, p['proj']['w'], p['proj']['b'])
    out = mlp_res(x2, p['ln2']['g'], p['ln2']['b'],
                  p['fc1']['w'], p['fc1']['b'], p['fc2']['w'], p['fc2']['b'])
    return out.reshape(b, l, c)


def cross_layer(x, kv, p):
    b, h, w, c = x.shape
    xt = x.reshape(b, h * w, c)
    kvt = kv.reshape(b, h * w, c)
    for blk in p['blocks']:
        xt = cross_block(xt, kvt, blk, p['heads'])
    return xt.reshape(b, h, w, c)


# ----------------------- entropy models / DEMUX etc --------------------------
def eb_logits_cumulative(p, x):
    logits = x
    n = len(p['matrices'])
    for i in range(n):
        m = jax.nn.softplus(p['matrices'][i])
        logits = jnp.einsum('cij,cjk->cik', m, logits) + p['biases'][i]
        if i < n - 1:
            logits = logits + jnp.tanh(p['factors'][i]) * jnp.tanh(logits)
    return logits


def entropy_bottleneck_forward(p, z, key):
    b, h, w, c = z.shape
    outputs = z + jax.random.uniform(key, z.shape, jnp.float32, -0.5, 0.5)
    v = outputs.reshape(-1, c).T.reshape(c, 1, -1)
    lower = eb_logits_cumulative(p, v - 0.5)
    upper = eb_logits_cumulative(p, v + 0.5)
    sign = -jnp.sign(lower + upper)
    lik = jnp.abs(jax.nn.sigmoid(sign * upper) - jax.nn.sigmoid(sign * lower))
    lik = jnp.maximum(lik, 1e-9)
    lik = lik.reshape(c, b * h * w).T.reshape(b, h, w, c)
    return outputs, lik


def demux(y):
    # TODO(synk): DEMUX/MUX source not provided — standard checkerboard
    # half-height rearrangement used (NHWC).
    b, h, w, c = y.shape
    na = jnp.zeros((b, h // 2, w, c), y.dtype)
    a = jnp.zeros_like(na)
    a = a.at[:, :, 0::2, :].set(y[:, 0::2, 1::2, :])
    a = a.at[:, :, 1::2, :].set(y[:, 1::2, 0::2, :])
    na = na.at[:, :, 0::2, :].set(y[:, 0::2, 0::2, :])
    na = na.at[:, :, 1::2, :].set(y[:, 1::2, 1::2, :])
    return na, a


def mux(non_anchor, anchor):
    b, hh, w, c = anchor.shape
    y = jnp.zeros((b, hh * 2, w, c), anchor.dtype)
    y = y.at[:, 0::2, 1::2, :].set(anchor[:, :, 0::2, :])
    y = y.at[:, 1::2, 0::2, :].set(anchor[:, :, 1::2, :])
    y = y.at[:, 0::2, 0::2, :].set(non_anchor[:, :, 0::2, :])
    y = y.at[:, 1::2, 1::2, :].set(non_anchor[:, :, 1::2, :])
    return y


# --------------------- rate adaption / channel / f_e,f_d ---------------------
def rate_adaption_enc(p, x, indexes):
    b, h, w, c = x.shape
    rnum, rmax = len(RATE_CHOICE), max(RATE_CHOICE)
    tokens = x.reshape(b * h * w, c)
    w_cat = p['w'].transpose(1, 0, 2).reshape(c, rnum * rmax)
    b_cat = p['b'].reshape(rnum * rmax)
    out_all = matmul_bias(tokens, w_cat, b_cat).reshape(-1, rnum, rmax)
    out = jnp.take_along_axis(out_all, indexes[:, None, None], axis=1)[:, 0, :]
    rc = jnp.asarray(RATE_CHOICE)
    mask = (jnp.arange(rmax)[None, :] < rc[indexes][:, None]).astype(jnp.float32)
    out = out * mask
    return out.reshape(b, h, w, rmax), mask.reshape(b, h, w, rmax)


def rate_adaption_dec(p, x, indexes):
    b, h, w, cr = x.shape
    rnum = len(RATE_CHOICE)
    cout = p['w'].shape[2]
    tokens = x.reshape(b * h * w, cr)
    w_cat = p['w'].transpose(1, 0, 2).reshape(cr, rnum * cout)
    b_cat = p['b'].reshape(rnum * cout)
    out_all = matmul_bias(tokens, w_cat, b_cat).reshape(-1, rnum, cout)
    out = jnp.take_along_axis(out_all, indexes[:, None, None], axis=1)[:, 0, :]
    return out.reshape(b, h, w, cout)


def f_e(params, x, likelihoods, eta):
    b, h, w, c = x.shape
    hx = jnp.maximum(-jnp.log(likelihoods) / math.log(2.0), 0.0)
    symbol_num = jnp.sum(hx, axis=-1).reshape(-1) * eta
    rc = jnp.asarray(RATE_CHOICE, jnp.float32)
    indexes = jnp.clip(jnp.searchsorted(rc, symbol_num), 0, len(RATE_CHOICE) - 1)
    rate_token = params['rate_token_enc'][indexes].reshape(b, h, w, c)
    x = x + rate_token
    x = swin_layer(x, params['f_e0'])
    x_masked, mask = rate_adaption_enc(params['ra_enc'], x, indexes)
    return x_masked, mask, indexes


def feature_pass_channel(s_masked, mask, key):
    # TODO(synk): Channel module source not provided — AWGN with power
    # normalization implemented.
    avg_pwr = jnp.sum(s_masked ** 2) / jnp.sum(mask)
    scale = jnp.sqrt(avg_pwr * 2.0)
    sigma = math.sqrt(1.0 / (2.0 * 10.0 ** (SNR_DB / 10.0)))
    noise = jax.random.normal(key, s_masked.shape, jnp.float32) * sigma
    s_hat = (s_masked / scale + noise) * scale
    s_hat = s_hat * mask
    channel_usage = jnp.sum(mask) / 2.0
    return s_hat, channel_usage


def f_d(params, x, indexes):
    x = rate_adaption_dec(params['ra_dec'], x, indexes)
    b, h, w, c = x.shape
    rate_token = params['rate_token_dec'][indexes].reshape(b, h, w, c)
    x = x + rate_token
    return swin_layer(x, params['f_d0'])


# ------------------------------ init -----------------------------------------
class PRNG:
    def __init__(self, seed):
        self.key = jax.random.PRNGKey(seed)

    def next(self):
        self.key, k = jax.random.split(self.key)
        return k


def init_linear(pg, din, dout, std=0.02):
    return {'w': jax.random.normal(pg.next(), (din, dout), jnp.float32) * std,
            'b': jnp.zeros((dout,), jnp.float32)}


def init_conv(pg, cin, cout, k, std=0.02):
    return {'w': jax.random.normal(pg.next(), (cout, cin, k, k), jnp.float32) * std,
            'b': jnp.zeros((cout,), jnp.float32)}


def init_deconv(pg, cin, cout, k, std=0.02):
    return {'w': jax.random.normal(pg.next(), (cin, cout, k, k), jnp.float32) * std,
            'b': jnp.zeros((cout,), jnp.float32)}


def init_ln(c):
    return {'g': jnp.ones((c,), jnp.float32), 'b': jnp.zeros((c,), jnp.float32)}


def init_nat_block(pg, dim, heads, k, h, w):
    hidden = int(dim * MLP_RATIO)
    rpb = jax.random.normal(pg.next(), (heads, 2 * k - 1, 2 * k - 1),
                            jnp.float32) * 0.02
    return {'ln1': init_ln(dim), 'qkv': init_linear(pg, dim, 3 * dim),
            'bias': nat_bias(h, w, k, rpb),          # precomputed once at init
            'proj': init_linear(pg, dim, dim), 'ln2': init_ln(dim),
            'fc1': init_linear(pg, dim, hidden), 'fc2': init_linear(pg, hidden, dim)}


def init_resvit(pg, dim, depth, heads, k, h, w):
    return {'blocks': [init_nat_block(pg, dim, heads, k, h, w)
                       for _ in range(depth)],
            'heads': heads}


def init_swin_block(pg, dim, heads, h, w):
    hidden = int(dim * MLP_RATIO)
    rpb = jax.random.normal(pg.next(), ((2 * h - 1) * (2 * w - 1), heads),
                            jnp.float32) * 0.02
    return {'ln1': init_ln(dim), 'qkv': init_linear(pg, dim, 3 * dim),
            'bias': swin_bias(h, w, rpb),            # precomputed once at init
            'proj': init_linear(pg, dim, dim), 'ln2': init_ln(dim),
            'fc1': init_linear(pg, dim, hidden), 'fc2': init_linear(pg, hidden, dim)}


def init_swin(pg, dim, depth, heads, h, w):
    return {'blocks': [init_swin_block(pg, dim, heads, h, w) for _ in range(depth)],
            'heads': heads}


def init_cross_block(pg, dim):
    hidden = int(dim * MLP_RATIO)
    return {'ln1': init_ln(dim), 'ln_kv': init_ln(dim),
            'q': init_linear(pg, dim, dim), 'kv': init_linear(pg, dim, 2 * dim),
            'proj': init_linear(pg, dim, dim), 'ln2': init_ln(dim),
            'fc1': init_linear(pg, dim, hidden), 'fc2': init_linear(pg, hidden, dim)}


def init_cross(pg, dim, depth, heads):
    return {'blocks': [init_cross_block(pg, dim) for _ in range(depth)],
            'heads': heads}


def init_entropy_bottleneck(pg, c, filters=(3, 3, 3, 3), init_scale=10.0):
    f = (1,) + filters + (1,)
    scale = init_scale ** (1.0 / (len(filters) + 1))
    mats, biases, factors = [], [], []
    for i in range(len(filters) + 1):
        init = math.log(math.expm1(1.0 / scale / f[i + 1]))
        mats.append(jnp.full((c, f[i + 1], f[i]), init, jnp.float32))
        biases.append(jax.random.uniform(pg.next(), (c, f[i + 1], 1),
                                         jnp.float32, -0.5, 0.5))
        if i < len(filters):
            factors.append(jnp.zeros((c, f[i + 1], 1), jnp.float32))
    return {'matrices': mats, 'biases': biases, 'factors': factors}


def init_params(seed=0, img_hw=(64, 64)):
    pg = PRNG(seed)
    n, m, k = N_CH, M_CH, NAT_KERNEL
    d, hd = NAT_DEPTHS, NAT_HEADS
    dr, hr = d[::-1], hd[::-1]
    H, W = img_hw
    r2, r4, r8, r16, r32, r64 = [(H // s, W // s) for s in (2, 4, 8, 16, 32, 64)]
    ntc = {}
    ntc['g_a0'] = init_conv(pg, 3, n, 5)
    ntc['g_a1'] = init_resvit(pg, n, d[0], hd[0], k, *r2)
    ntc['g_a2'] = init_conv(pg, n, n * 3 // 2, 3)
    ntc['g_a3'] = init_resvit(pg, n * 3 // 2, d[1], hd[1], k, *r4)
    ntc['g_a4'] = init_conv(pg, n * 3 // 2, n * 2, 3)
    ntc['g_a5'] = init_resvit(pg, n * 2, d[2], hd[2], k, *r8)
    ntc['g_a6'] = init_conv(pg, n * 2, m, 3)
    ntc['g_a7'] = init_resvit(pg, m, d[3], hd[3], k, *r16)
    ntc['h_a0'] = init_conv(pg, m, n * 3 // 2, 3)
    ntc['h_a1'] = init_resvit(pg, n * 3 // 2, d[4], hd[4], k // 2, *r32)
    ntc['h_a2'] = init_conv(pg, n * 3 // 2, n * 3 // 2, 3)
    ntc['h_a3'] = init_resvit(pg, n * 3 // 2, d[5], hd[5], k // 2, *r64)
    ntc['h_s0'] = init_resvit(pg, n * 3 // 2, dr[0], hr[0], k // 2, *r64)
    ntc['h_s1'] = init_deconv(pg, n * 3 // 2, n * 3 // 2, 3)
    ntc['h_s2'] = init_resvit(pg, n * 3 // 2, dr[1], hr[1], k // 2, *r32)
    ntc['h_s3'] = init_deconv(pg, n * 3 // 2, m * 2, 3)
    ntc['g_s0'] = init_resvit(pg, m, dr[2], hr[2], k, *r16)
    ntc['g_s1'] = init_deconv(pg, m, n * 2, 3)
    ntc['g_s2'] = init_resvit(pg, n * 2, dr[3], hr[3], k, *r8)
    ntc['g_s3'] = init_deconv(pg, n * 2, n * 3 // 2, 3)
    ntc['g_s4'] = init_resvit(pg, n * 3 // 2, dr[4], hr[4], k, *r4)
    ntc['g_s5'] = init_deconv(pg, n * 3 // 2, n, 3)
    ntc['g_s6'] = init_resvit(pg, n, dr[5], hr[5], k, *r2)
    ntc['g_s7'] = init_deconv(pg, n, 3, 5)
    ntc['eb'] = init_entropy_bottleneck(pg, n * 3 // 2)
    ntc['sc'] = init_conv(pg, m, m * 2, 5)
    msk = np.zeros((1, 1, 5, 5), np.float32)
    msk[:, :, 0::2, 1::2] = 1.0
    msk[:, :, 1::2, 0::2] = 1.0
    ntc['sc_mask'] = jnp.asarray(msk)
    ntc['ep0'] = init_conv(pg, m * 12 // 3, m * 10 // 3, 1)
    ntc['ep1'] = init_conv(pg, m * 10 // 3, m * 8 // 3, 1)
    ntc['ep2'] = init_conv(pg, m * 8 // 3, m * 6 // 3, 1)

    params = {'ntc': ntc}
    # Spatial of the JSCC stage: y is (B, 4, 4, M) -> DEMUXed halves are (B, 2, 4, M)
    jh, jw = r16[0] // 2, r16[1]
    params['f_e0'] = init_swin(pg, m, 1, SWIN_HEADS, jh, jw)
    params['f_d0'] = init_swin(pg, m, 1, SWIN_HEADS, jh, jw)
    params['trans_sep_enc'] = init_swin(pg, m, 1, SWIN_HEADS, jh, jw)
    params['trans_sep_dec'] = init_swin(pg, m, 1, SWIN_HEADS, jh, jw)
    params['trans_ctx_enc'] = init_cross(pg, m, 1, SWIN_HEADS)
    params['trans_ctx_dec'] = init_cross(pg, m, 1, SWIN_HEADS)
    rnum, rmax = len(RATE_CHOICE), max(RATE_CHOICE)
    params['ra_enc'] = {'w': jax.random.normal(pg.next(), (rnum, m, rmax)) * 0.02,
                        'b': jnp.zeros((rnum, rmax), jnp.float32)}
    params['ra_dec'] = {'w': jax.random.normal(pg.next(), (rnum, rmax, m)) * 0.02,
                        'b': jnp.zeros((rnum, m), jnp.float32)}
    params['rate_token_enc'] = jax.random.normal(pg.next(), (rnum, m)) * 0.02
    params['rate_token_dec'] = jax.random.normal(pg.next(), (rnum, m)) * 0.02
    return params


# ------------------------------- model ---------------------------------------
def g_a(ntc, x):
    x = conv2d(x, ntc['g_a0']['w'], ntc['g_a0']['b'], stride=2, padding=2)
    x = resvit_block(x, ntc['g_a1'])
    x = conv2d(x, ntc['g_a2']['w'], ntc['g_a2']['b'], stride=2, padding=1)
    x = resvit_block(x, ntc['g_a3'])
    x = conv2d(x, ntc['g_a4']['w'], ntc['g_a4']['b'], stride=2, padding=1)
    x = resvit_block(x, ntc['g_a5'])
    x = conv2d(x, ntc['g_a6']['w'], ntc['g_a6']['b'], stride=2, padding=1)
    x = resvit_block(x, ntc['g_a7'])
    return x


def h_a(ntc, x):
    x = conv2d(x, ntc['h_a0']['w'], ntc['h_a0']['b'], stride=2, padding=1)
    x = resvit_block(x, ntc['h_a1'])
    x = conv2d(x, ntc['h_a2']['w'], ntc['h_a2']['b'], stride=2, padding=1)
    x = resvit_block(x, ntc['h_a3'])
    return x


def h_s(ntc, x):
    x = resvit_block(x, ntc['h_s0'])
    x = deconv2d(x, ntc['h_s1']['w'], ntc['h_s1']['b'], 2, 1, 1)
    x = resvit_block(x, ntc['h_s2'])
    x = deconv2d(x, ntc['h_s3']['w'], ntc['h_s3']['b'], 2, 1, 1)
    return x


def g_s(ntc, x):
    x = resvit_block(x, ntc['g_s0'])
    x = deconv2d(x, ntc['g_s1']['w'], ntc['g_s1']['b'], 2, 1, 1)
    x = resvit_block(x, ntc['g_s2'])
    x = deconv2d(x, ntc['g_s3']['w'], ntc['g_s3']['b'], 2, 1, 1)
    x = resvit_block(x, ntc['g_s4'])
    x = deconv2d(x, ntc['g_s5']['w'], ntc['g_s5']['b'], 2, 1, 1)
    x = resvit_block(x, ntc['g_s6'])
    x = deconv2d(x, ntc['g_s7']['w'], ntc['g_s7']['b'], 2, 2, 1)
    return x


def ntscc_plus_forward(params, x_nchw, rng):
    keys = jax.random.split(rng, 4)
    ntc = params['ntc']
    x = x_nchw.transpose(0, 2, 3, 1)                 # NCHW -> NHWC internally

    y = g_a(ntc, x)
    z = h_a(ntc, y)
    z_tilde, z_lik = entropy_bottleneck_forward(ntc['eb'], z, keys[0])
    hyper_params = h_s(ntc, z_tilde)

    y_tilde = y + jax.random.uniform(keys[1], y.shape, jnp.float32, -0.5, 0.5)
    y_half = y_tilde
    x_hat_ntc = g_s(ntc, y_tilde)

    y_half = y_half.at[:, 0::2, 0::2, :].set(0.0)
    y_half = y_half.at[:, 1::2, 1::2, :].set(0.0)
    sc_w = ntc['sc']['w'] * ntc['sc_mask']
    sc_params = conv2d(y_half, sc_w, ntc['sc']['b'], stride=1, padding=2)
    sc_params = sc_params.at[:, 0::2, 1::2, :].set(0.0)
    sc_params = sc_params.at[:, 1::2, 0::2, :].set(0.0)

    ep_in = jnp.concatenate([hyper_params, sc_params], axis=-1)
    h = conv2d(ep_in, ntc['ep0']['w'], ntc['ep0']['b'], 1, 0)
    h = jax.nn.gelu(h, approximate=False)
    h = conv2d(h, ntc['ep1']['w'], ntc['ep1']['b'], 1, 0)
    h = jax.nn.gelu(h, approximate=False)
    gaussian_params = conv2d(h, ntc['ep2']['w'], ntc['ep2']['b'], 1, 0)
    scales_hat, means_hat = jnp.split(gaussian_params, 2, axis=-1)

    y_noisy = y + jax.random.uniform(keys[2], y.shape, jnp.float32, -0.5, 0.5)
    y_lik = gaussian_likelihood(y_noisy, scales_hat, means_hat)

    lik_na, lik_a = demux(y_lik)
    y_na, y_a = demux(y)
    y_a_sep = swin_layer(y_a, params['trans_sep_enc'])
    y_na_sep = swin_layer(y_na, params['trans_sep_enc'])
    y_na_ctx = cross_layer(y_na_sep, y_a_sep, params['trans_ctx_enc'])

    y_concat = jnp.concatenate([y_a_sep, y_na_ctx], axis=0)
    lik_concat = jnp.concatenate([lik_a, lik_na], axis=0)
    s_masked, mask, indexes = f_e(params, y_concat, lik_concat, ETA)
    s_hat, channel_usage = feature_pass_channel(s_masked, mask, keys[3])
    y_hat_concat = f_d(params, s_hat, indexes)

    y_hat_a, y_hat_na = jnp.split(y_hat_concat, 2, axis=0)
    y_hat_a = swin_layer(y_hat_a, params['trans_sep_dec'])
    y_hat_na = cross_layer(y_hat_na, y_hat_a, params['trans_ctx_dec'])
    y_hat_na = swin_layer(y_hat_na, params['trans_sep_dec'])
    y_hat = mux(y_hat_na, y_hat_a)
    x_hat = g_s(ntc, y_hat)

    return {'x_hat': x_hat.transpose(0, 3, 1, 2),
            'x_hat_ntc': x_hat_ntc.transpose(0, 3, 1, 2),
            'indexes': indexes, 'k': channel_usage,
            'likelihoods': {'y': y_lik.transpose(0, 3, 1, 2),
                            'z': z_lik.transpose(0, 3, 1, 2)}}


# -------------------------------- main ----------------------------------------
if __name__ == "__main__":
    params = init_params(seed=0)
    x = jax.random.uniform(jax.random.PRNGKey(0), (2, 3, 64, 64), jnp.float32)
    out = ntscc_plus_forward(params, x, jax.random.PRNGKey(42))
    out = jax.block_until_ready(out)

    assert out['x_hat'].shape == (2, 3, 64, 64)
    assert out['x_hat_ntc'].shape == (2, 3, 64, 64)
    assert out['likelihoods']['y'].shape == (2, M_CH, 4, 4)
    assert out['likelihoods']['z'].shape == (2, N_CH * 3 // 2, 1, 1)
    assert out['indexes'].shape == (2 * 2 * 2 * 4,)
    assert np.all(np.isfinite(np.asarray(out['x_hat'])))
    assert np.all(np.isfinite(np.asarray(out['x_hat_ntc'])))
    print("KERNEL_OK")
</pallas_src>

<mosaic_0001>
module attributes {stable_mosaic.version = 11 : i64} {
  func.func @_matmul_bias_kernel(%arg0: i32, %arg1: memref<512x75xf32, #tpu.memory_space<vmem>>, %arg2: memref<75x8xf32, #tpu.memory_space<vmem>>, %arg3: memref<1x8xf32, #tpu.memory_space<vmem>>, %arg4: memref<512x8xf32, #tpu.memory_space<vmem>>) attributes {dimension_semantics = [#tpu.dimension_semantics<parallel>], iteration_bounds = array<i64: 4>, scalar_prefetch = 0 : i64, scratch_operands = 0 : i64, tpu.core_type = #tpu.core_type<tc>, window_params = [{transform_indices = @transform_0, window_bounds = array<i64: 512, 75>}, {pipeline_mode = #tpu.pipeline_mode<synchronous>, transform_indices = @transform_1, window_bounds = array<i64: 75, 8>}, {pipeline_mode = #tpu.pipeline_mode<synchronous>, transform_indices = @transform_2, window_bounds = array<i64: 1, 8>}, {transform_indices = @transform_3, window_bounds = array<i64: 512, 8>}]} {
    %c0 = arith.constant 0 : index
    %c0_0 = arith.constant 0 : index
    %0 = vector.load %arg1[%c0, %c0_0] : memref<512x75xf32, #tpu.memory_space<vmem>>, vector<512x75xf32>
    %1 = arith.truncf %0 : vector<512x75xf32> to vector<512x75xbf16>
    %c0_1 = arith.constant 0 : index
    %c0_2 = arith.constant 0 : index
    %2 = vector.load %arg2[%c0_1, %c0_2] : memref<75x8xf32, #tpu.memory_space<vmem>>, vector<75x8xf32>
    %3 = arith.truncf %2 : vector<75x8xf32> to vector<75x8xbf16>
    %cst = arith.constant dense<0.000000e+00> : vector<512x8xf32>
    %4 = tpu.matmul %1, %3, %cst {dimension_numbers = #tpu.dot_dimension_numbers<[1], [0], [0], [1], [0, 0, 1, 1], [], []>} : vector<512x75xbf16>, vector<75x8xbf16>, vector<512x8xf32> -> vector<512x8xf32>
    %c0_3 = arith.constant 0 : index
    %c0_4 = arith.constant 0 : index
    %5 = vector.load %arg3[%c0_3, %c0_4] : memref<1x8xf32, #tpu.memory_space<vmem>>, vector<1x8xf32>
    %6 = vector.broadcast %5 : vector<1x8xf32> to vector<512x8xf32>
    %7 = arith.addf %4, %6 : vector<512x8xf32>
    %c0_5 = arith.constant 0 : index
    %c0_6 = arith.constant 0 : index
    %8 = vector.load %arg4[%c0_5, %c0_6] : memref<512x8xf32, #tpu.memory_space<vmem>>, vector<512x8xf32>
    tpu.vector_store %arg4[%c0_5, %c0_6], %7 {strides = array<i32>} : memref<512x8xf32, #tpu.memory_space<vmem>>, vector<512x8xf32>,
    return
  }
  func.func @transform_0(%arg0: i32) -> (i32, i32) {
    %c0_i32 = arith.constant 0 : i32
    %c0_i32_0 = arith.constant 0 : i32
    return %arg0, %c0_i32 : i32, i32
  }
  func.func @transform_1(%arg0: i32) -> (i32, i32) {
    %c0_i32 = arith.constant 0 : i32
    %c0_i32_0 = arith.constant 0 : i32
    %c0_i32_1 = arith.constant 0 : i32
    return %c0_i32, %c0_i32_0 : i32, i32
  }
  func.func @transform_2(%arg0: i32) -> (i32, i32) {
    %c0_i32 = arith.constant 0 : i32
    %c0_i32_0 = arith.constant 0 : i32
    %c0_i32_1 = arith.constant 0 : i32
    return %c0_i32, %c0_i32_0 : i32, i32
  }
  func.func @transform_3(%arg0: i32) -> (i32, i32) {
    %c0_i32 = arith.constant 0 : i32
    %c0_i32_0 = arith.constant 0 : i32
    return %arg0, %c0_i32 : i32, i32
  }
}

</mosaic_0001>

<llo_original>
// kernel: tpu_custom_call.1
$region0: #{tpu_custom_call.1}
  #allocation0 [shape = 'u32[]', space=smem, size = 0x4, offset = 0x4, fixed_abs, tag = 'smem constant byte address 0x4 - core index']
  #allocation1 [shape = 'u32[144,128]{1,0:T(1,128)}', space=vmem, size = 0x12000, scoped, tag = 'internal scratch']
  %s0 = inlined_call_operand.vmem [shape: f32[2048,75], index: 0, kind: input, shape index: {}]
  %s1 = inlined_call_operand.vmem [shape: f32[75,8], index: 1, kind: input, shape index: {}]
  %s2 = inlined_call_operand.vmem [shape: f32[1,8], index: 2, kind: input, shape index: {}]
  %s3 = inlined_call_operand.vmem [shape: f32[2048,8], index: 3, kind: output, shape index: {}]
  %s4 = sld [smem:[#allocation0]]
  $region45: #{tpu_custom_call.1} parent=0
    _
  %s6 = ssub.s32 1, %s4
  %s7 = scalar_select 0, %s6, %s4
  loop: start=0, step=1, limit=6
  $region2: #{tpu_custom_call.1} parent=0 // loop_pre_header
    _
  $region3: #{tpu_custom_call.1} parent=0 // loop_header
    %s9 = sphi 0, %s13
    %p10 = scmp.ge.s32.totalorder %s9, 6
    %s19 = sphi 0, %s21
    %s22 = sphi 0, %s19
    %s23 = sphi 0, %s22
    %s39 = sphi 0, %s23
    %s43 = sphi 0, %s43
    %s45 = sphi 0, %s43
    %s46 = sphi 0, %s45
    %s60 = sphi 0, %s46
    %s64 = sphi 0, %s64
    %s66 = sphi 0, %s64
    %s67 = sphi 0, %s66
    %s81 = sphi 0, %s67
    %s87 = sphi 0, %s89
    %s90 = sphi 0, %s87
    %s91 = sphi 0, %s90
    %s107 = sphi 0, %s91
  $region4: #{tpu_custom_call.1} parent=0 // loop_header_branch
    %12 = sbr.rel (%p10) target = $region8
  $region5: #{tpu_custom_call.1} parent=0 // loop_body
    %s14 = ssub.s32 %s9, 1
    %s15 = ssub.s32 %s9, 2
    %s16 = sadd.s32 %s9, 1
    %s17 = ssub.s32 %s9, %s16
    %p18 = scmp.eq.s32.totalorder %s17, 0
    %s20 = sadd.s32 %s19, 1
    %s21 = scalar_select %p18, %s19, %s20
    %p24 = pneg %p18
    %p25 = scmp.eq.s32.totalorder %s9, 3
    %p26 = por %p24, %p25
    %p27 = scmp.ne.s32.totalorder %s19, %s22
    %p28 = scmp.eq.s32.totalorder %s9, 0
    %p29 = por %p27, %p28
    %p30 = scmp.ne.s32.totalorder %s19, %s22
    %p31 = scmp.eq.s32.totalorder %s14, 3
    %p32 = por %p30, %p31
    %p33 = scmp.ne.s32.totalorder %s22, %s23
    %p34 = scmp.eq.s32.totalorder %s14, 0
    %p35 = por %p33, %p34
    %p36 = scmp.ne.s32.totalorder %s22, %s23
    %p37 = scmp.eq.s32.totalorder %s15, 3
    %p38 = por %p36, %p37
    %p40 = scmp.ne.s32.totalorder %s23, %s39
    %p41 = scmp.eq.s32.totalorder %s15, 0
    %p42 = por %p40, %p41
    %s44 = sadd.s32 %s43, 1
    %p47 = scmp.eq.s32.totalorder %s9, 3
    %p48 = scmp.ne.s32.totalorder %s43, %s45
    %p49 = scmp.eq.s32.totalorder %s9, 0
    %p50 = por %p48, %p49
    %p51 = scmp.ne.s32.totalorder %s43, %s45
    %p52 = scmp.eq.s32.totalorder %s14, 3
    %p53 = por %p51, %p52
    %p54 = scmp.ne.s32.totalorder %s45, %s46
    %p55 = scmp.eq.s32.totalorder %s14, 0
    %p56 = por %p54, %p55
    %p57 = scmp.ne.s32.totalorder %s45, %s46
    %p58 = scmp.eq.s32.totalorder %s15, 3
    %p59 = por %p57, %p58
    %p61 = scmp.ne.s32.totalorder %s46, %s60
    %p62 = scmp.eq.s32.totalorder %s15, 0
    %p63 = por %p61, %p62
    %s65 = sadd.s32 %s64, 1
    %p68 = scmp.eq.s32.totalorder %s9, 3
    %p69 = scmp.ne.s32.totalorder %s64, %s66
    %p70 = scmp.eq.s32.totalorder %s9, 0
    %p71 = por %p69, %p70
    %p72 = scmp.ne.s32.totalorder %s64, %s66
    %p73 = scmp.eq.s32.totalorder %s14, 3
    %p74 = por %p72, %p73
    %p75 = scmp.ne.s32.totalorder %s66, %s67
    %p76 = scmp.eq.s32.totalorder %s14, 0
    %p77 = por %p75, %p76
    %p78 = scmp.ne.s32.totalorder %s66, %s67
    %p79 = scmp.eq.s32.totalorder %s15, 3
    %p80 = por %p78, %p79
    %p82 = scmp.ne.s32.totalorder %s67, %s81
    %p83 = scmp.eq.s32.totalorder %s15, 0
    %p84 = por %p82, %p83
    %s85 = ssub.s32 %s9, %s16
    %p86 = scmp.eq.s32.totalorder %s85, 0
    %s88 = sadd.s32 %s87, 1
    %s89 = scalar_select %p86, %s87, %s88
    %p92 = pneg %p86
    %p93 = scmp.eq.s32.totalorder %s9, 3
    %p94 = por %p92, %p93
    %p95 = scmp.ne.s32.totalorder %s87, %s90
    %p96 = scmp.eq.s32.totalorder %s9, 0
    %p97 = por %p95, %p96
    %p98 = scmp.ne.s32.totalorder %s87, %s90
    %p99 = scmp.eq.s32.totalorder %s14, 3
    %p100 = por %p98, %p99
    %p101 = scmp.ne.s32.totalorder %s90, %s91
    %p102 = scmp.eq.s32.totalorder %s14, 0
    %p103 = por %p101, %p102
    %p104 = scmp.ne.s32.totalorder %s90, %s91
    %p105 = scmp.eq.s32.totalorder %s15, 3
    %p106 = por %p104, %p105
    %p108 = scmp.ne.s32.totalorder %s91, %s107
    %p109 = scmp.eq.s32.totalorder %s15, 0
    %p110 = por %p108, %p109
    %p111 = scmp.le.s32.totalorder 1, %s9
    %p112 = scmp.lt.s32.totalorder %s9, 5
    %p113 = pnand %p111, %p112
    %p114 = pneg %p113
    // Predicated region
    $region9: #{tpu_custom_call.1} parent=5 // pred_check
      _
    $region10: #{tpu_custom_call.1} parent=5 // pred_check_branch
      %116 = sbr.rel (%p113) target = $region12
    $region11: #{tpu_custom_call.1} parent=5 // pred_region
      %s117 = ssub.s32 %s9, 1
      // Predicated region
      $region13: #{tpu_custom_call.1} parent=11 // pred_check
        %p118 = pneg %p56
      $region14: #{tpu_custom_call.1} parent=11 // pred_check_branch
        %120 = sbr.rel (%p118) target = $region16
      $region15: #{tpu_custom_call.1} parent=11 // pred_region
        _
      $region16: #{tpu_custom_call.1} parent=11 // pred_fallthru
        _
      // Predicated region
      $region17: #{tpu_custom_call.1} parent=11 // pred_check
        %p121 = pneg %p77
      $region18: #{tpu_custom_call.1} parent=11 // pred_check_branch
        %123 = sbr.rel (%p121) target = $region20
      $region19: #{tpu_custom_call.1} parent=11 // pred_region
        _
      $region20: #{tpu_custom_call.1} parent=11 // pred_fallthru
        _
    $region12: #{tpu_custom_call.1} parent=5 // pred_fallthru
      _
    %p124 = scmp.lt.s32.totalorder %s9, 4
    // Predicated region
    $region21: #{tpu_custom_call.1} parent=5 // pred_check
      %p125 = pneg %p124
    $region22: #{tpu_custom_call.1} parent=5 // pred_check_branch
      %127 = sbr.rel (%p125) target = $region24
    $region23: #{tpu_custom_call.1} parent=5 // pred_region
      // Predicated region
      $region25: #{tpu_custom_call.1} parent=23 // pred_check
        %p128 = pneg %p29
      $region26: #{tpu_custom_call.1} parent=23 // pred_check_branch
        %130 = sbr.rel (%p128) target = $region28
      $region27: #{tpu_custom_call.1} parent=23 // pred_region
        %s131 = smul.u32 64, %s9
        %p132 = scmp.lt.s32.totalorder %s131, 255
        %s133 = scalar_select %p132, %s131, 255
        %s134 = smul.addr %s133, 8
        %s135 = scalar_lea.vmem %s0, %s134
        %s136 = smul.u32 64, %s9
      $region28: #{tpu_custom_call.1} parent=23 // pred_fallthru
        _
    $region24: #{tpu_custom_call.1} parent=5 // pred_fallthru
      _
    %p137 = scmp.le.s32.totalorder 1, %s9
    %p138 = scmp.lt.s32.totalorder %s9, 5
    %p139 = pnand %p137, %p138
    %p140 = pneg %p139
    // Predicated region
    $region29: #{tpu_custom_call.1} parent=5 // pred_check
      _
    $region30: #{tpu_custom_call.1} parent=5 // pred_check_branch
      %142 = sbr.rel (%p139) target = $region32
    $region31: #{tpu_custom_call.1} parent=5 // pred_region
      %s143 = ssub.s32 %s9, 1
      %s144 = smul.u32 64, %s14
      %p145 = scmp.lt.s32.totalorder %s144, 255
      %s146 = scalar_select %p145, %s144, 255
      %s147 = smul.addr %s146, 8
      %s148 = scalar_lea.vmem %s0, %s147
      %p149 = pneg %p35
      %p150 = pneg %p32
      %p151 = pneg %p56
      %p152 = pneg %p53
      %p153 = pneg %p77
      %p154 = pneg %p74
      %p155 = pneg %p103
      %p156 = pneg %p100
      %s157 = smul.u32 64, %s14
      %p158 = scmp.lt.s32.totalorder %s157, 255
      %s159 = scalar_select %p158, %s157, 255
      %s160 = smul.addr %s159, 8
      %s161 = scalar_lea.vmem %s3, %s160
      %s162 = smul.u32 64, %s14
      %p163 = scmp.lt.s32.totalorder %s162, 255
      %s164 = scalar_select %p163, %s162, 255
      %s165 = smul.addr %s164, 8
      %s166 = scalar_lea.vmem %s0, %s165
      %s167 = smul.u32 64, %s14
      %s168 = smul.u32 64, %s14
      %p169 = scmp.lt.s32.totalorder %s168, 255
      %s170 = scalar_select %p169, %s168, 255
      %s171 = smul.addr %s170, 8
      %s172 = scalar_lea.vmem %s3, %s171
      %s173 = smul.u32 64, %s14
      %v175 = vld [vmem:[%s166] sm:$0xff]
      %v176 = vld [vmem:[%s166 + $0x8] sm:$0xff]
      %v177 = vld [vmem:[%s166 + $0x10] sm:$0xff]
      %v178 = vld [vmem:[%s166 + $0x18] sm:$0xff]
      %v179 = vld [vmem:[%s166 + $0x20] sm:$0xff]
      %v180 = vld [vmem:[%s166 + $0x28] sm:$0xff]
      %v181 = vld [vmem:[%s166 + $0x30] sm:$0xff]
      %v182 = vld [vmem:[%s166 + $0x38] sm:$0xff]
      %v183 = vld [vmem:[%s166 + $0x40] sm:$0xff]
      %v184 = vld [vmem:[%s166 + $0x48] sm:$0xff]
      %v185 = vld [vmem:[%s166 + $0x50] sm:$0xff]
      %v186 = vld [vmem:[%s166 + $0x58] sm:$0xff]
      %v187 = vld [vmem:[%s166 + $0x60] sm:$0xff]
      %v188 = vld [vmem:[%s166 + $0x68] sm:$0xff]
      %v189 = vld [vmem:[%s166 + $0x70] sm:$0xff]
      %v190 = vld [vmem:[%s166 + $0x78] sm:$0xff]
      %v191 = vld [vmem:[%s166 + $0x80] sm:$0xff]
      %v192 = vld [vmem:[%s166 + $0x88] sm:$0xff]
      %v193 = vld [vmem:[%s166 + $0x90] sm:$0xff]
      %v194 = vld [vmem:[%s166 + $0x98] sm:$0xff]
      %v195 = vld [vmem:[%s166 + $0xa0] sm:$0xff]
      %v196 = vld [vmem:[%s166 + $0xa8] sm:$0xff]
      %v197 = vld [vmem:[%s166 + $0xb0] sm:$0xff]
      %v198 = vld [vmem:[%s166 + $0xb8] sm:$0xff]
      %v199 = vld [vmem:[%s166 + $0xc0] sm:$0xff]
      %v200 = vld [vmem:[%s166 + $0xc8] sm:$0xff]
      %v201 = vld [vmem:[%s166 + $0xd0] sm:$0xff]
      %v202 = vld [vmem:[%s166 + $0xd8] sm:$0xff]
      %v203 = vld [vmem:[%s166 + $0xe0] sm:$0xff]
      %v204 = vld [vmem:[%s166 + $0xe8] sm:$0xff]
      %v205 = vld [vmem:[%s166 + $0xf0] sm:$0xff]
      %v206 = vld [vmem:[%s166 + $0xf8] sm:$0xff]
      %v207 = vld [vmem:[%s166 + $0x100] sm:$0xff]
      %v208 = vld [vmem:[%s166 + $0x108] sm:$0xff]
      %v209 = vld [vmem:[%s166 + $0x110] sm:$0xff]
      %v210 = vld [vmem:[%s166 + $0x118] sm:$0xff]
      %v211 = vld [vmem:[%s166 + $0x120] sm:$0xff]
      %v212 = vld [vmem:[%s166 + $0x128] sm:$0xff]
      %v213 = vld [vmem:[%s166 + $0x130] sm:$0xff]
      %v214 = vld [vmem:[%s166 + $0x138] sm:$0xff]
      %v215 = vld [vmem:[%s166 + $0x140] sm:$0xff]
      %v216 = vld [vmem:[%s166 + $0x148] sm:$0xff]
      %v217 = vld [vmem:[%s166 + $0x150] sm:$0xff]
      %v218 = vld [vmem:[%s166 + $0x158] sm:$0xff]
      %v219 = vld [vmem:[%s166 + $0x160] sm:$0xff]
      %v220 = vld [vmem:[%s166 + $0x168] sm:$0xff]
      %v221 = vld [vmem:[%s166 + $0x170] sm:$0xff]
      %v222 = vld [vmem:[%s166 + $0x178] sm:$0xff]
      %v223 = vld [vmem:[%s166 + $0x180] sm:$0xff]
      %v224 = vld [vmem:[%s166 + $0x188] sm:$0xff]
      %v225 = vld [vmem:[%s166 + $0x190] sm:$0xff]
      %v226 = vld [vmem:[%s166 + $0x198] sm:$0xff]
      %v227 = vld [vmem:[%s166 + $0x1a0] sm:$0xff]
      %v228 = vld [vmem:[%s166 + $0x1a8] sm:$0xff]
      %v229 = vld [vmem:[%s166 + $0x1b0] sm:$0xff]
      %v230 = vld [vmem:[%s166 + $0x1b8] sm:$0xff]
      %v231 = vld [vmem:[%s166 + $0x1c0] sm:$0xff]
      %v232 = vld [vmem:[%s166 + $0x1c8] sm:$0xff]
      %v233 = vld [vmem:[%s166 + $0x1d0] sm:$0xff]
      %v234 = vld [vmem:[%s166 + $0x1d8] sm:$0xff]
      %v235 = vld [vmem:[%s166 + $0x1e0] sm:$0xff]
      %v236 = vld [vmem:[%s166 + $0x1e8] sm:$0xff]
      %v237 = vld [vmem:[%s166 + $0x1f0] sm:$0xff]
      %v238 = vld [vmem:[%s166 + $0x1f8] sm:$0xff]
      %v239 = vpack.c.bf16 %v176, %v175
      %v240 = vpack.c.bf16 %v178, %v177
      %v241 = vpack.c.bf16 %v180, %v179
      %v242 = vpack.c.bf16 %v182, %v181
      %v243 = vpack.c.bf16 %v184, %v183
      %v244 = vpack.c.bf16 %v186, %v185
      %v245 = vpack.c.bf16 %v188, %v187
      %v246 = vpack.c.bf16 %v190, %v189
      %v247 = vpack.c.bf16 %v192, %v191
      %v248 = vpack.c.bf16 %v194, %v193
      %v249 = vpack.c.bf16 %v196, %v195
      %v250 = vpack.c.bf16 %v198, %v197
      %v251 = vpack.c.bf16 %v200, %v199
      %v252 = vpack.c.bf16 %v202, %v201
      %v253 = vpack.c.bf16 %v204, %v203
      %v254 = vpack.c.bf16 %v206, %v205
      %v255 = vpack.c.bf16 %v208, %v207
      %v256 = vpack.c.bf16 %v210, %v209
      %v257 = vpack.c.bf16 %v212, %v211
      %v258 = vpack.c.bf16 %v214, %v213
      %v259 = vpack.c.bf16 %v216, %v215
      %v260 = vpack.c.bf16 %v218, %v217
      %v261 = vpack.c.bf16 %v220, %v219
      %v262 = vpack.c.bf16 %v222, %v221
      %v263 = vpack.c.bf16 %v224, %v223
      %v264 = vpack.c.bf16 %v226, %v225
      %v265 = vpack.c.bf16 %v228, %v227
      %v266 = vpack.c.bf16 %v230, %v229
      %v267 = vpack.c.bf16 %v232, %v231
      %v268 = vpack.c.bf16 %v234, %v233
      %v269 = vpack.c.bf16 %v236, %v235
      %v270 = vpack.c.bf16 %v238, %v237
      %v271 = vld [vmem:[%s1] sm:$0xff]
      %v272 = vld [vmem:[%s1 + $0x8] sm:$0xff]
      %v273 = vld [vmem:[%s1 + $0x10] sm:$0xff]
      %v274 = vld [vmem:[%s1 + $0x18] sm:$0xff]
      %v275 = vld [vmem:[%s1 + $0x20] sm:$0xff]
      %v276 = vld [vmem:[%s1 + $0x28] sm:$0xff]
      %v277 = vld [vmem:[%s1 + $0x30] sm:$0xff]
      %v278 = vld [vmem:[%s1 + $0x38] sm:$0xff]
      %v279 = vld [vmem:[%s1 + $0x40] sm:$0xff]
      %v280 = vld [vmem:[%s1 + $0x48] sm:$0x7]
      %v281 = vpack.c.bf16 %v272, %v271
      %v282 = vpack.c.bf16 %v274, %v273
      %v283 = vpack.c.bf16 %v276, %v275
      %v284 = vpack.c.bf16 %v278, %v277
      %v285 = vpack.c.bf16 %v280, %v279
      %v286 = vld [vmem:[%s2] sm:$0x1]
      %v288 = vlaneseq
      %v289 = vshrl.u32 %v288, 7
      %v290 = vsub.s32 0, %v289
      %v291 = vrot.slane %v286, %v290
      %vm293 = vcmask 613376
      %v295 = vsel %vm293, %v239, 0
      %v298 = vsel %vm293, %v240, 0
      %v301 = vsel %vm293, %v241, 0
      %v304 = vsel %vm293, %v242, 0
      %v307 = vsel %vm293, %v243, 0
      %v310 = vsel %vm293, %v244, 0
      %v313 = vsel %vm293, %v245, 0
      %v316 = vsel %vm293, %v246, 0
      %v319 = vsel %vm293, %v247, 0
      %v322 = vsel %vm293, %v248, 0
      %v325 = vsel %vm293, %v249, 0
      %v328 = vsel %vm293, %v250, 0
      %v331 = vsel %vm293, %v251, 0
      %v334 = vsel %vm293, %v252, 0
      %v337 = vsel %vm293, %v253, 0
      %v340 = vsel %vm293, %v254, 0
      %v343 = vsel %vm293, %v255, 0
      %v346 = vsel %vm293, %v256, 0
      %v349 = vsel %vm293, %v257, 0
      %v352 = vsel %vm293, %v258, 0
      %v355 = vsel %vm293, %v259, 0
      %v358 = vsel %vm293, %v260, 0
      %v361 = vsel %vm293, %v261, 0
      %v364 = vsel %vm293, %v262, 0
      %v367 = vsel %vm293, %v263, 0
      %v370 = vsel %vm293, %v264, 0
      %v373 = vsel %vm293, %v265, 0
      %v376 = vsel %vm293, %v266, 0
      %v379 = vsel %vm293, %v267, 0
      %v382 = vsel %vm293, %v268, 0
      %v385 = vsel %vm293, %v269, 0
      %v388 = vsel %vm293, %v270, 0
      %vm390 = vcmask 1044480
      %vm391 = vcmask 1045504
      %v392 = vsel %vm390, 4294967295, 65535
      %v393 = vsel %vm391, %v392, 0
      %v395 = vand.u32 %v285, %v393
      %397 = vmatprep.subr.bf16.mxu0 0
      %398 = vmatpush1.bf16.msra.mxu0 0
      %399 = vmatprep.subr.bf16.mxu0 0
      %400 = vmatpush1.bf16.msra.mxu0 0
      %401 = vmatprep.subr.bf16.mxu0 0
      %402 = vmatpush1.bf16.msra.mxu0 0
      %403 = vmatprep.subr.bf16.mxu0 0
      %404 = vmatpush1.bf16.msra.mxu0 %v395
      %405 = vmatprep.subr.bf16.mxu0 0
      %406 = vmatpush1.bf16.msra.mxu0 %v284
      %407 = vmatprep.subr.bf16.mxu0 0
      %408 = vmatpush1.bf16.msra.mxu0 %v283
      %409 = vmatprep.subr.bf16.mxu0 0
      %410 = vmatpush1.bf16.msra.mxu0 %v282
      %411 = vmatprep.subr.bf16.mxu0 0
      %412 = vmatpush1.bf16.msra.mxu0 %v281
      %413 = vmatprep.subr.bf16.mxu0 0
      %414 = vmatpush2.bf16.msra.mxu0 0
      %415 = vmatprep.subr.bf16.mxu0 0
      %416 = vmatpush2.bf16.msra.mxu0 0
      %417 = vmatprep.subr.bf16.mxu0 0
      %418 = vmatpush2.bf16.msra.mxu0 0
      %419 = vmatprep.subr.bf16.mxu0 0
      %420 = vmatpush2.bf16.msra.mxu0 0
      %421 = vmatprep.subr.bf16.mxu0 0
      %422 = vmatpush2.bf16.msra.mxu0 0
      %423 = vmatprep.subr.bf16.mxu0 0
      %424 = vmatpush2.bf16.msra.mxu0 0
      %425 = vmatprep.subr.bf16.mxu0 0
      %426 = vmatpush2.bf16.msra.mxu0 0
      %427 = vmatprep.subr.bf16.mxu0 0
      %428 = vmatpush2.bf16.msra.mxu0 0
      %429 = vmatprep.mubr.bf16.mxu0 0
      %430 = vmatmul.mubr.bf16.gmra.mxu0 %v295
      %v431 = vpop.f32.mrf.mxu0
      %v432 = vadd.f32 %v291, %v431
      %v433 = vpop.f32.mrf.mxu0
      %v434 = vpop.f32.mrf.mxu0
      %v435 = vadd.f32 %v291, %v434
      %v436 = vpop.f32.mrf.mxu0
      %437 = vmatprep.mubr.bf16.mxu0 0
      %438 = vmatmul.mubr.bf16.gmra.mxu0 %v298
      %v439 = vpop.f32.mrf.mxu0
      %v440 = vadd.f32 %v291, %v439
      %v441 = vpop.f32.mrf.mxu0
      %v442 = vpop.f32.mrf.mxu0
      %v443 = vadd.f32 %v291, %v442
      %v444 = vpop.f32.mrf.mxu0
      %445 = vmatprep.mubr.bf16.mxu0 0
      %446 = vmatmul.mubr.bf16.gmra.mxu0 %v301
      %v447 = vpop.f32.mrf.mxu0
      %v448 = vadd.f32 %v291, %v447
      %v449 = vpop.f32.mrf.mxu0
      %v450 = vpop.f32.mrf.mxu0
      %v451 = vadd.f32 %v291, %v450
      %v452 = vpop.f32.mrf.mxu0
      %453 = vmatprep.mubr.bf16.mxu0 0
      %454 = vmatmul.mubr.bf16.gmra.mxu0 %v304
      %v455 = vpop.f32.mrf.mxu0
      %v456 = vadd.f32 %v291, %v455
      %v457 = vpop.f32.mrf.mxu0
      %v458 = vpop.f32.mrf.mxu0
      %v459 = vadd.f32 %v291, %v458
      %v460 = vpop.f32.mrf.mxu0
      %461 = vmatprep.mubr.bf16.mxu0 0
      %462 = vmatmul.mubr.bf16.gmra.mxu0 %v307
      %v463 = vpop.f32.mrf.mxu0
      %v464 = vadd.f32 %v291, %v463
      %v465 = vpop.f32.mrf.mxu0
      %v466 = vpop.f32.mrf.mxu0
      %v467 = vadd.f32 %v291, %v466
      %v468 = vpop.f32.mrf.mxu0
      %469 = vmatprep.mubr.bf16.mxu0 0
      %470 = vmatmul.mubr.bf16.gmra.mxu0 %v310
      %v471 = vpop.f32.mrf.mxu0
      %v472 = vadd.f32 %v291, %v471
      %v473 = vpop.f32.mrf.mxu0
      %v474 = vpop.f32.mrf.mxu0
      %v475 = vadd.f32 %v291, %v474
      %v476 = vpop.f32.mrf.mxu0
      %477 = vmatprep.mubr.bf16.mxu0 0
      %478 = vmatmul.mubr.bf16.gmra.mxu0 %v313
      %v479 = vpop.f32.mrf.mxu0
      %v480 = vadd.f32 %v291, %v479
      %v481 = vpop.f32.mrf.mxu0
      %v482 = vpop.f32.mrf.mxu0
      %v483 = vadd.f32 %v291, %v482
      %v484 = vpop.f32.mrf.mxu0
      %485 = vmatprep.mubr.bf16.mxu0 0
      %486 = vmatmul.mubr.bf16.gmra.mxu0 %v316
      %v487 = vpop.f32.mrf.mxu0
      %v488 = vadd.f32 %v291, %v487
      %v489 = vpop.f32.mrf.mxu0
      %v490 = vpop.f32.mrf.mxu0
      %v491 = vadd.f32 %v291, %v490
      %v492 = vpop.f32.mrf.mxu0
      %493 = vmatprep.mubr.bf16.mxu0 0
      %494 = vmatmul.mubr.bf16.gmra.mxu0 %v319
      %v495 = vpop.f32.mrf.mxu0
      %v496 = vadd.f32 %v291, %v495
      %v497 = vpop.f32.mrf.mxu0
      %v498 = vpop.f32.mrf.mxu0
      %v499 = vadd.f32 %v291, %v498
      %v500 = vpop.f32.mrf.mxu0
      %501 = vmatprep.mubr.bf16.mxu0 0
      %502 = vmatmul.mubr.bf16.gmra.mxu0 %v322
      %v503 = vpop.f32.mrf.mxu0
      %v504 = vadd.f32 %v291, %v503
      %v505 = vpop.f32.mrf.mxu0
      %v506 = vpop.f32.mrf.mxu0
      %v507 = vadd.f32 %v291, %v506
      %v508 = vpop.f32.mrf.mxu0
      %509 = vmatprep.mubr.bf16.mxu0 0
      %510 = vmatmul.mubr.bf16.gmra.mxu0 %v325
      %v511 = vpop.f32.mrf.mxu0
      %v512 = vadd.f32 %v291, %v511
      %v513 = vpop.f32.mrf.mxu0
      %v514 = vpop.f32.mrf.mxu0
      %v515 = vadd.f32 %v291, %v514
      %v516 = vpop.f32.mrf.mxu0
      %517 = vmatprep.mubr.bf16.mxu0 0
      %518 = vmatmul.mubr.bf16.gmra.mxu0 %v328
      %v519 = vpop.f32.mrf.mxu0
      %v520 = vadd.f32 %v291, %v519
      %v521 = vpop.f32.mrf.mxu0
      %v522 = vpop.f32.mrf.mxu0
      %v523 = vadd.f32 %v291, %v522
      %v524 = vpop.f32.mrf.mxu0
      %525 = vmatprep.mubr.bf16.mxu0 0
      %526 = vmatmul.mubr.bf16.gmra.mxu0 %v331
      %v527 = vpop.f32.mrf.mxu0
      %v528 = vadd.f32 %v291, %v527
      %v529 = vpop.f32.mrf.mxu0
      %v530 = vpop.f32.mrf.mxu0
      %v531 = vadd.f32 %v291, %v530
      %v532 = vpop.f32.mrf.mxu0
      %533 = vmatprep.mubr.bf16.mxu0 0
      %534 = vmatmul.mubr.bf16.gmra.mxu0 %v334
      %v535 = vpop.f32.mrf.mxu0
      %v536 = vadd.f32 %v291, %v535
      %v537 = vpop.f32.mrf.mxu0
      %v538 = vpop.f32.mrf.mxu0
      %v539 = vadd.f32 %v291, %v538
      %v540 = vpop.f32.mrf.mxu0
      %541 = vmatprep.mubr.bf16.mxu0 0
      %542 = vmatmul.mubr.bf16.gmra.mxu0 %v337
      %v543 = vpop.f32.mrf.mxu0
      %v544 = vadd.f32 %v291, %v543
      %v545 = vpop.f32.mrf.mxu0
      %v546 = vpop.f32.mrf.mxu0
      %v547 = vadd.f32 %v291, %v546
      %v548 = vpop.f32.mrf.mxu0
      %549 = vmatprep.mubr.bf16.mxu0 0
      %550 = vmatmul.mubr.bf16.gmra.mxu0 %v340
      %v551 = vpop.f32.mrf.mxu0
      %v552 = vadd.f32 %v291, %v551
      %v553 = vpop.f32.mrf.mxu0
      %v554 = vpop.f32.mrf.mxu0
      %v555 = vadd.f32 %v291, %v554
      %v556 = vpop.f32.mrf.mxu0
      %557 = vmatprep.mubr.bf16.mxu0 0
      %558 = vmatmul.mubr.bf16.gmra.mxu0 %v343
      %v559 = vpop.f32.mrf.mxu0
      %v560 = vadd.f32 %v291, %v559
      %v561 = vpop.f32.mrf.mxu0
      %v562 = vpop.f32.mrf.mxu0
      %v563 = vadd.f32 %v291, %v562
      %v564 = vpop.f32.mrf.mxu0
      %565 = vmatprep.mubr.bf16.mxu0 0
      %566 = vmatmul.mubr.bf16.gmra.mxu0 %v346
      %v567 = vpop.f32.mrf.mxu0
      %v568 = vadd.f32 %v291, %v567
      %v569 = vpop.f32.mrf.mxu0
      %v570 = vpop.f32.mrf.mxu0
      %v571 = vadd.f32 %v291, %v570
      %v572 = vpop.f32.mrf.mxu0
      %573 = vmatprep.mubr.bf16.mxu0 0
      %574 = vmatmul.mubr.bf16.gmra.mxu0 %v349
      %v575 = vpop.f32.mrf.mxu0
      %v576 = vadd.f32 %v291, %v575
      %v577 = vpop.f32.mrf.mxu0
      %v578 = vpop.f32.mrf.mxu0
      %v579 = vadd.f32 %v291, %v578
      %v580 = vpop.f32.mrf.mxu0
      %581 = vmatprep.mubr.bf16.mxu0 0
      %582 = vmatmul.mubr.bf16.gmra.mxu0 %v352
      %v583 = vpop.f32.mrf.mxu0
      %v584 = vadd.f32 %v291, %v583
      %v585 = vpop.f32.mrf.mxu0
      %v586 = vpop.f32.mrf.mxu0
      %v587 = vadd.f32 %v291, %v586
      %v588 = vpop.f32.mrf.mxu0
      %589 = vmatprep.mubr.bf16.mxu0 0
      %590 = vmatmul.mubr.bf16.gmra.mxu0 %v355
      %v591 = vpop.f32.mrf.mxu0
      %v592 = vadd.f32 %v291, %v591
      %v593 = vpop.f32.mrf.mxu0
      %v594 = vpop.f32.mrf.mxu0
      %v595 = vadd.f32 %v291, %v594
      %v596 = vpop.f32.mrf.mxu0
      %597 = vmatprep.mubr.bf16.mxu0 0
      %598 = vmatmul.mubr.bf16.gmra.mxu0 %v358
      %v599 = vpop.f32.mrf.mxu0
      %v600 = vadd.f32 %v291, %v599
      %v601 = vpop.f32.mrf.mxu0
      %v602 = vpop.f32.mrf.mxu0
      %v603 = vadd.f32 %v291, %v602
      %v604 = vpop.f32.mrf.mxu0
      %605 = vmatprep.mubr.bf16.mxu0 0
      %606 = vmatmul.mubr.bf16.gmra.mxu0 %v361
      %v607 = vpop.f32.mrf.mxu0
      %v608 = vadd.f32 %v291, %v607
      %v609 = vpop.f32.mrf.mxu0
      %v610 = vpop.f32.mrf.mxu0
      %v611 = vadd.f32 %v291, %v610
      %v612 = vpop.f32.mrf.mxu0
      %613 = vmatprep.mubr.bf16.mxu0 0
      %614 = vmatmul.mubr.bf16.gmra.mxu0 %v364
      %v615 = vpop.f32.mrf.mxu0
      %v616 = vadd.f32 %v291, %v615
      %v617 = vpop.f32.mrf.mxu0
      %v618 = vpop.f32.mrf.mxu0
      %v619 = vadd.f32 %v291, %v618
      %v620 = vpop.f32.mrf.mxu0
      %621 = vmatprep.mubr.bf16.mxu0 0
      %622 = vmatmul.mubr.bf16.gmra.mxu0 %v367
      %v623 = vpop.f32.mrf.mxu0
      %v624 = vadd.f32 %v291, %v623
      %v625 = vpop.f32.mrf.mxu0
      %v626 = vpop.f32.mrf.mxu0
      %v627 = vadd.f32 %v291, %v626
      %v628 = vpop.f32.mrf.mxu0
      %629 = vmatprep.mubr.bf16.mxu0 0
      %630 = vmatmul.mubr.bf16.gmra.mxu0 %v370
      %v631 = vpop.f32.mrf.mxu0
      %v632 = vadd.f32 %v291, %v631
      %v633 = vpop.f32.mrf.mxu0
      %v634 = vpop.f32.mrf.mxu0
      %v635 = vadd.f32 %v291, %v634
      %v636 = vpop.f32.mrf.mxu0
      %637 = vmatprep.mubr.bf16.mxu0 0
      %638 = vmatmul.mubr.bf16.gmra.mxu0 %v373
      %v639 = vpop.f32.mrf.mxu0
      %v640 = vadd.f32 %v291, %v639
      %v641 = vpop.f32.mrf.mxu0
      %v642 = vpop.f32.mrf.mxu0
      %v643 = vadd.f32 %v291, %v642
      %v644 = vpop.f32.mrf.mxu0
      %645 = vmatprep.mubr.bf16.mxu0 0
      %646 = vmatmul.mubr.bf16.gmra.mxu0 %v376
      %v647 = vpop.f32.mrf.mxu0
      %v648 = vadd.f32 %v291, %v647
      %v649 = vpop.f32.mrf.mxu0
      %v650 = vpop.f32.mrf.mxu0
      %v651 = vadd.f32 %v291, %v650
      %v652 = vpop.f32.mrf.mxu0
      %653 = vmatprep.mubr.bf16.mxu0 0
      %654 = vmatmul.mubr.bf16.gmra.mxu0 %v379
      %v655 = vpop.f32.mrf.mxu0
      %v656 = vadd.f32 %v291, %v655
      %v657 = vpop.f32.mrf.mxu0
      %v658 = vpop.f32.mrf.mxu0
      %v659 = vadd.f32 %v291, %v658
      %v660 = vpop.f32.mrf.mxu0
      %661 = vmatprep.mubr.bf16.mxu0 0
      %662 = vmatmul.mubr.bf16.gmra.mxu0 %v382
      %v663 = vpop.f32.mrf.mxu0
      %v664 = vadd.f32 %v291, %v663
      %v665 = vpop.f32.mrf.mxu0
      %v666 = vpop.f32.mrf.mxu0
      %v667 = vadd.f32 %v291, %v666
      %v668 = vpop.f32.mrf.mxu0
      %669 = vmatprep.mubr.bf16.mxu0 0
      %670 = vmatmul.mubr.bf16.gmra.mxu0 %v385
      %v671 = vpop.f32.mrf.mxu0
      %v672 = vadd.f32 %v291, %v671
      %v673 = vpop.f32.mrf.mxu0
      %v674 = vpop.f32.mrf.mxu0
      %v675 = vadd.f32 %v291, %v674
      %v676 = vpop.f32.mrf.mxu0
      %677 = vmatprep.mubr.bf16.mxu0 0
      %678 = vmatmul.mubr.bf16.gmra.mxu0 %v388
      %v679 = vpop.f32.mrf.mxu0
      %v680 = vadd.f32 %v291, %v679
      %v681 = vpop.f32.mrf.mxu0
      %v682 = vpop.f32.mrf.mxu0
      %v683 = vadd.f32 %v291, %v682
      %v684 = vpop.f32.mrf.mxu0
      %685 = vdwg.mxu0
      %vm686 = vcmask 64512
      %687 = vst.msk [vmem:[%s172] sm:$0xff] %vm686, %v432
      %688 = vst.msk [vmem:[%s172 + $0x8] sm:$0xff] %vm686, %v435
      %689 = vst.msk [vmem:[%s172 + $0x10] sm:$0xff] %vm686, %v440
      %690 = vst.msk [vmem:[%s172 + $0x18] sm:$0xff] %vm686, %v443
      %691 = vst.msk [vmem:[%s172 + $0x20] sm:$0xff] %vm686, %v448
      %692 = vst.msk [vmem:[%s172 + $0x28] sm:$0xff] %vm686, %v451
      %693 = vst.msk [vmem:[%s172 + $0x30] sm:$0xff] %vm686, %v456
      %694 = vst.msk [vmem:[%s172 + $0x38] sm:$0xff] %vm686, %v459
      %695 = vst.msk [vmem:[%s172 + $0x40] sm:$0xff] %vm686, %v464
      %696 = vst.msk [vmem:[%s172 + $0x48] sm:$0xff] %vm686, %v467
      %697 = vst.msk [vmem:[%s172 + $0x50] sm:$0xff] %vm686, %v472
      %698 = vst.msk [vmem:[%s172 + $0x58] sm:$0xff] %vm686, %v475
      %699 = vst.msk [vmem:[%s172 + $0x60] sm:$0xff] %vm686, %v480
      %700 = vst.msk [vmem:[%s172 + $0x68] sm:$0xff] %vm686, %v483
      %701 = vst.msk [vmem:[%s172 + $0x70] sm:$0xff] %vm686, %v488
      %702 = vst.msk [vmem:[%s172 + $0x78] sm:$0xff] %vm686, %v491
      %703 = vst.msk [vmem:[%s172 + $0x80] sm:$0xff] %vm686, %v496
      %704 = vst.msk [vmem:[%s172 + $0x88] sm:$0xff] %vm686, %v499
      %705 = vst.msk [vmem:[%s172 + $0x90] sm:$0xff] %vm686, %v504
      %706 = vst.msk [vmem:[%s172 + $0x98] sm:$0xff] %vm686, %v507
      %707 = vst.msk [vmem:[%s172 + $0xa0] sm:$0xff] %vm686, %v512
      %708 = vst.msk [vmem:[%s172 + $0xa8] sm:$0xff] %vm686, %v515
      %709 = vst.msk [vmem:[%s172 + $0xb0] sm:$0xff] %vm686, %v520
      %710 = vst.msk [vmem:[%s172 + $0xb8] sm:$0xff] %vm686, %v523
      %711 = vst.msk [vmem:[%s172 + $0xc0] sm:$0xff] %vm686, %v528
      %712 = vst.msk [vmem:[%s172 + $0xc8] sm:$0xff] %vm686, %v531
      %713 = vst.msk [vmem:[%s172 + $0xd0] sm:$0xff] %vm686, %v536
      %714 = vst.msk [vmem:[%s172 + $0xd8] sm:$0xff] %vm686, %v539
      %715 = vst.msk [vmem:[%s172 + $0xe0] sm:$0xff] %vm686, %v544
      %716 = vst.msk [vmem:[%s172 + $0xe8] sm:$0xff] %vm686, %v547
      %717 = vst.msk [vmem:[%s172 + $0xf0] sm:$0xff] %vm686, %v552
      %718 = vst.msk [vmem:[%s172 + $0xf8] sm:$0xff] %vm686, %v555
      %719 = vst.msk [vmem:[%s172 + $0x100] sm:$0xff] %vm686, %v560
      %720 = vst.msk [vmem:[%s172 + $0x108] sm:$0xff] %vm686, %v563
      %721 = vst.msk [vmem:[%s172 + $0x110] sm:$0xff] %vm686, %v568
      %722 = vst.msk [vmem:[%s172 + $0x118] sm:$0xff] %vm686, %v571
      %723 = vst.msk [vmem:[%s172 + $0x120] sm:$0xff] %vm686, %v576
      %724 = vst.msk [vmem:[%s172 + $0x128] sm:$0xff] %vm686, %v579
      %725 = vst.msk [vmem:[%s172 + $0x130] sm:$0xff] %vm686, %v584
      %726 = vst.msk [vmem:[%s172 + $0x138] sm:$0xff] %vm686, %v587
      %727 = vst.msk [vmem:[%s172 + $0x140] sm:$0xff] %vm686, %v592
      %728 = vst.msk [vmem:[%s172 + $0x148] sm:$0xff] %vm686, %v595
      %729 = vst.msk [vmem:[%s172 + $0x150] sm:$0xff] %vm686, %v600
      %730 = vst.msk [vmem:[%s172 + $0x158] sm:$0xff] %vm686, %v603
      %731 = vst.msk [vmem:[%s172 + $0x160] sm:$0xff] %vm686, %v608
      %732 = vst.msk [vmem:[%s172 + $0x168] sm:$0xff] %vm686, %v611
      %733 = vst.msk [vmem:[%s172 + $0x170] sm:$0xff] %vm686, %v616
      %734 = vst.msk [vmem:[%s172 + $0x178] sm:$0xff] %vm686, %v619
      %735 = vst.msk [vmem:[%s172 + $0x180] sm:$0xff] %vm686, %v624
      %736 = vst.msk [vmem:[%s172 + $0x188] sm:$0xff] %vm686, %v627
      %737 = vst.msk [vmem:[%s172 + $0x190] sm:$0xff] %vm686, %v632
      %738 = vst.msk [vmem:[%s172 + $0x198] sm:$0xff] %vm686, %v635
      %739 = vst.msk [vmem:[%s172 + $0x1a0] sm:$0xff] %vm686, %v640
      %740 = vst.msk [vmem:[%s172 + $0x1a8] sm:$0xff] %vm686, %v643
      %741 = vst.msk [vmem:[%s172 + $0x1b0] sm:$0xff] %vm686, %v648
      %742 = vst.msk [vmem:[%s172 + $0x1b8] sm:$0xff] %vm686, %v651
      %743 = vst.msk [vmem:[%s172 + $0x1c0] sm:$0xff] %vm686, %v656
      %744 = vst.msk [vmem:[%s172 + $0x1c8] sm:$0xff] %vm686, %v659
      %745 = vst.msk [vmem:[%s172 + $0x1d0] sm:$0xff] %vm686, %v664
      %746 = vst.msk [vmem:[%s172 + $0x1d8] sm:$0xff] %vm686, %v667
      %747 = vst.msk [vmem:[%s172 + $0x1e0] sm:$0xff] %vm686, %v672
      %748 = vst.msk [vmem:[%s172 + $0x1e8] sm:$0xff] %vm686, %v675
      %749 = vst.msk [vmem:[%s172 + $0x1f0] sm:$0xff] %vm686, %v680
      %750 = vst.msk [vmem:[%s172 + $0x1f8] sm:$0xff] %vm686, %v683
      %s751 = smul.u32 64, %s14
      %p752 = scmp.lt.s32.totalorder %s751, 255
      %s753 = scalar_select %p752, %s751, 255
      %s754 = smul.addr %s753, 8
      %s755 = scalar_lea.vmem %s3, %s754
      // Predicated region
      $region33: #{tpu_custom_call.1} parent=31 // pred_check
        %p756 = pneg %p100
      $region34: #{tpu_custom_call.1} parent=31 // pred_check_branch
        %758 = sbr.rel (%p756) target = $region36
      $region35: #{tpu_custom_call.1} parent=31 // pred_region
        %s759 = smul.u32 64, %s14
      $region36: #{tpu_custom_call.1} parent=31 // pred_fallthru
        _
    $region32: #{tpu_custom_call.1} parent=5 // pred_fallthru
      _
    %p760 = scmp.le.s32.totalorder 2, %s9
    // Predicated region
    $region37: #{tpu_custom_call.1} parent=5 // pred_check
      %p761 = pneg %p760
    $region38: #{tpu_custom_call.1} parent=5 // pred_check_branch
      %763 = sbr.rel (%p761) target = $region40
    $region39: #{tpu_custom_call.1} parent=5 // pred_region
      %s764 = ssub.s32 %s9, 2
      // Predicated region
      $region41: #{tpu_custom_call.1} parent=39 // pred_check
        %p765 = pneg %p106
      $region42: #{tpu_custom_call.1} parent=39 // pred_check_branch
        %767 = sbr.rel (%p765) target = $region44
      $region43: #{tpu_custom_call.1} parent=39 // pred_region
        %s768 = smul.u32 64, %s15
        %p769 = scmp.lt.s32.totalorder %s768, 255
        %s770 = scalar_select %p769, %s768, 255
        %s771 = smul.addr %s770, 8
        %s772 = scalar_lea.vmem %s3, %s771
      $region44: #{tpu_custom_call.1} parent=39 // pred_fallthru
        _
    $region40: #{tpu_custom_call.1} parent=5 // pred_fallthru
      _
  $region6: #{tpu_custom_call.1} parent=0 // loop_footer
    %s13 = sadd.s32 1, %s9
  $region7: #{tpu_custom_call.1} parent=0 // loop_footer_branch
    %8 = sbr.rel target = $region3
  $region8: #{tpu_custom_call.1} parent=0 // loop_exit
    _

</llo_original>
